<compile_context>
chip_gen: v7x
topology: tpu7x:2x2x1
jax: 0.10.0
libtpu: 0.0.40
codegen_flags: <defaults>
</compile_context>

<pallas_src>
import functools

import jax
import jax.numpy as jnp
from jax.experimental import pallas as pl
from jax.experimental.pallas import tpu as pltpu

BN_EPS = 1e-5
LANE = 128
SUBLANE = 8


def _round_up(x, m):
    return (x + m - 1) // m * m


def _fused_mlp_kernel(x_ref, *refs, num_layers, dot_dtype, d_out_final, approx_recip):
    """Whole MLP on one batch tile: ReLU(x@W0'+b0') -> ... -> sigmoid((.@W_last'+b_last')[:, :d_out])."""
    o_ref = refs[-1]
    wb_refs = refs[:-1]
    h = x_ref[...]                                   # already in dot_dtype (cast in wrapper)
    for li in range(num_layers):
        w_ref = wb_refs[2 * li]
        b_ref = wb_refs[2 * li + 1]
        z = jnp.dot(h, w_ref[...], preferred_element_type=jnp.float32)
        z = z + b_ref[...]                           # (tile_n, Dp) + (1, Dp), f32
        if li < num_layers - 1:
            # ReLU (Dropout = identity in eval); carry activation in the matmul dtype.
            h = jnp.maximum(z, 0.0).astype(dot_dtype)
        else:
            # Head: BN already folded.  Only the valid output lanes are touched.
            zh = z[:, :d_out_final]
            h = pl.reciprocal(1.0 + jnp.exp(-zh), approx=approx_recip)   # sigmoid
    o_ref[...] = h.astype(o_ref.dtype)


def _resident_spec(shape):
    """Whole-array, VMEM-resident operand (constant index_map); single-buffered if supported."""
    try:
        return pl.BlockSpec(shape, lambda i: (0, 0), pipeline_mode=pl.Buffered(1))
    except TypeError:  # older jax without pipeline_mode kwarg
        return pl.BlockSpec(shape, lambda i: (0, 0))


def fold_and_pad_params(params, *, use_bf16):
    """Fold eval BatchNorm + Linear bias into each layer's (W, b); zero-pad output feature dims to
    multiples of 128 lanes (input feature dim of the first layer is kept as-is)."""
    # NOTE: if a layer has a very large BN scale (tiny running var), bf16 weights would amplify
    # rounding; with typical running stats this is well inside the 5e-2 tolerance used below.
    prepared = []
    d_prev_pad = params[0]["w"].shape[0]          # x feature dim, left unpadded
    for p in params:
        d_in, d_out = p["w"].shape
        d_out_pad = _round_up(d_out, LANE)
        scale = p["gamma"] * jax.lax.rsqrt(p["var"] + BN_EPS)          # gamma / sqrt(var+eps)
        w_f = (p["w"] * scale[None, :]).astype(jnp.float32)
        b_f = ((p["b"] - p["mean"]) * scale + p["beta"]).astype(jnp.float32)
        w_pad = jnp.zeros((d_prev_pad, d_out_pad), jnp.float32).at[:d_in, :d_out].set(w_f)
        b_pad = jnp.zeros((1, d_out_pad), jnp.float32).at[0, :d_out].set(b_f)
        if use_bf16:
            w_pad = w_pad.astype(jnp.bfloat16)
        prepared.append((w_pad, b_pad))
        d_prev_pad = d_out_pad
    return prepared


def fused_mlp_forward(x, prepared, d_out_final, *, tile_n=None, use_bf16=True):
    """x: (N, D_in) f32. prepared: list of (W'_padded, b'_padded). Returns (N, d_out_final) f32."""
    n, d_in = x.shape
    num_layers = len(prepared)
    dot_dtype = jnp.bfloat16 if use_bf16 else jnp.float32
    itemsize = 2 if use_bf16 else 4
    x_in = x.astype(dot_dtype)                                   # halve x HBM read on bf16 path

    # Batch-tile size: multiple of 16 rows (bf16 sublane packing) / 8 (f32); capped at 1024 rows
    # (near HBM roofline, amortizes ~0.35 us/step); sized for >=2 grid steps when N allows so the
    # "parallel" axis can shard across v7x's two TensorCores.
    mult = 2 * SUBLANE if use_bf16 else SUBLANE
    if tile_n is None:
        tile_n = max(mult, min(1024, _round_up(pl.cdiv(n, 2), mult)))
    else:
        tile_n = max(mult, _round_up(tile_n, mult))
    grid = (pl.cdiv(n, tile_n),)                                 # no jnp.pad: ragged last block is masked

    kernel = functools.partial(
        _fused_mlp_kernel,
        num_layers=num_layers,
        dot_dtype=dot_dtype,
        d_out_final=d_out_final,
        approx_recip=use_bf16,                                   # exact divide on the f32 path
    )

    in_specs = [pl.BlockSpec((tile_n, d_in), lambda i: (i, 0))]  # x batch tile (pipelined)
    operands = [x_in]
    for w, b in prepared:                                        # VMEM-resident, single buffer
        in_specs.append(_resident_spec(w.shape))
        in_specs.append(_resident_spec(b.shape))
        operands.append(w)
        operands.append(b)

    # Explicit VMEM budget: params (single-buffered) + double-buffered x/out tiles + per-layer
    # f32 activation scratch, +20% headroom; clamped to [32 MiB, 64 MiB] (v7x physical per TC).
    param_bytes = sum(w.size * w.dtype.itemsize + b.size * b.dtype.itemsize for w, b in prepared)
    max_dpad = max(w.shape[1] for w, _ in prepared)
    x_tile_bytes = tile_n * d_in * itemsize
    out_tile_bytes = tile_n * d_out_final * 4
    act_bytes = 4 * tile_n * max_dpad * 4
    vmem_limit = int(min(64 * 2**20,
                         max(int(1.2 * (param_bytes + 2 * (x_tile_bytes + out_tile_bytes) + act_bytes)),
                             32 * 2**20)))

    flops = 2 * n * sum(w.shape[0] * w.shape[1] for w, _ in prepared)
    bytes_accessed = n * d_in * itemsize + param_bytes + n * d_out_final * 4
    cost = pl.CostEstimate(flops=flops,
                           transcendentals=n * d_out_final,
                           bytes_accessed=bytes_accessed)

    return pl.pallas_call(
        kernel,
        out_shape=jax.ShapeDtypeStruct((n, d_out_final), jnp.float32),
        grid=grid,
        in_specs=in_specs,
        out_specs=pl.BlockSpec((tile_n, d_out_final), lambda i: (i, 0)),
        compiler_params=pltpu.CompilerParams(
            dimension_semantics=("parallel",),
            vmem_limit_bytes=vmem_limit),
        cost_estimate=cost,
    )(*operands)


@functools.partial(jax.jit, static_argnames=("use_bf16", "tile_n"))
def baseline_network_forward(x, params, *, use_bf16=True, tile_n=None):
    """Eval-mode BaselineNetwork forward: [Linear->BN->ReLU(->Dropout=id)]* then
    Linear->BN->Sigmoid, all inside a single fused pallas_call."""
    # TODO(synk): training-mode Dropout / batch-statistics BatchNorm not implemented (eval semantics only).
    prepared = fold_and_pad_params(params, use_bf16=use_bf16)
    d_out_final = params[-1]["w"].shape[1]
    return fused_mlp_forward(x, prepared, d_out_final, tile_n=tile_n, use_bf16=use_bf16)


def init_params(layer_dims, key):
    """Deterministic synthetic parameters for each Linear + BatchNorm1d pair."""
    params = []
    for d_in, d_out in zip(layer_dims[:-1], layer_dims[1:]):
        key, kw, kb, kg, kbe, km, kv = jax.random.split(key, 7)
        bound = 1.0 / jnp.sqrt(d_in)
        params.append(dict(
            w=jax.random.uniform(kw, (d_in, d_out), jnp.float32, -bound, bound),
            b=jax.random.uniform(kb, (d_out,), jnp.float32, -bound, bound),
            gamma=1.0 + 0.1 * jax.random.normal(kg, (d_out,), jnp.float32),
            beta=0.1 * jax.random.normal(kbe, (d_out,), jnp.float32),
            mean=0.1 * jax.random.normal(km, (d_out,), jnp.float32),
            var=jnp.abs(jax.random.normal(kv, (d_out,), jnp.float32)) + 0.5,
        ))
    return params


def reference_forward(x, params):
    """Pure-JAX reference (unfused, unfolded eval-mode math) for correctness checking."""
    n_layers = len(params)
    h = x
    for li, p in enumerate(params):
        z = h @ p["w"] + p["b"]
        y = p["gamma"] * (z - p["mean"]) / jnp.sqrt(p["var"] + BN_EPS) + p["beta"]
        h = jax.nn.sigmoid(y) if li == n_layers - 1 else jnp.maximum(y, 0.0)
    return h


if __name__ == "__main__":
    layer_dims = [32, 64, 32, 1]   # small MLP: two hidden blocks + sigmoid head
    batch = 8                      # intentionally not a tile multiple -> exercises ragged last block

    key = jax.random.PRNGKey(0)
    key, kx = jax.random.split(key)
    x = jax.random.normal(kx, (batch, layer_dims[0]), jnp.float32)
    params = init_params(layer_dims, key)

    ref = reference_forward(x, params)

    # f32-operand matmul path: semantics check (BN folding only reassociates f32 math).
    out_f32 = jax.block_until_ready(baseline_network_forward(x, params, use_bf16=False))
    assert out_f32.shape == (batch, layer_dims[-1])
    assert jnp.allclose(out_f32, ref, atol=1e-3, rtol=1e-3), "f32 mismatch vs reference"

    # bf16-operand matmul path (f32 accumulation) — preferred on v6e/v7x MXU.
    out_bf16 = jax.block_until_ready(baseline_network_forward(x, params, use_bf16=True))
    assert out_bf16.shape == (batch, layer_dims[-1])
    assert jnp.allclose(out_bf16, ref, atol=5e-2), "bf16 mismatch vs reference"

    print("KERNEL_OK")
</pallas_src>

<mosaic_0001>
module attributes {stable_mosaic.version = 11 : i64} {
  func.func @_fused_mlp_kernel(%arg0: i32, %arg1: memref<8x32xf32, #tpu.memory_space<vmem>>, %arg2: memref<32x128xf32, #tpu.memory_space<vmem>>, %arg3: memref<1x128xf32, #tpu.memory_space<vmem>>, %arg4: memref<128x128xf32, #tpu.memory_space<vmem>>, %arg5: memref<1x128xf32, #tpu.memory_space<vmem>>, %arg6: memref<128x128xf32, #tpu.memory_space<vmem>>, %arg7: memref<1x128xf32, #tpu.memory_space<vmem>>, %arg8: memref<8x1xf32, #tpu.memory_space<vmem>>) attributes {dimension_semantics = [#tpu.dimension_semantics<parallel>], iteration_bounds = array<i64: 1>, scalar_prefetch = 0 : i64, scratch_operands = 0 : i64, tpu.core_type = #tpu.core_type<tc>, window_params = [{transform_indices = @transform_0, window_bounds = array<i64: 8, 32>}, {pipeline_mode = #tpu.pipeline_mode<synchronous>, transform_indices = @transform_1, window_bounds = array<i64: 32, 128>}, {pipeline_mode = #tpu.pipeline_mode<synchronous>, transform_indices = @transform_2, window_bounds = array<i64: 1, 128>}, {pipeline_mode = #tpu.pipeline_mode<synchronous>, transform_indices = @transform_3, window_bounds = array<i64: 128, 128>}, {pipeline_mode = #tpu.pipeline_mode<synchronous>, transform_indices = @transform_4, window_bounds = array<i64: 1, 128>}, {pipeline_mode = #tpu.pipeline_mode<synchronous>, transform_indices = @transform_5, window_bounds = array<i64: 128, 128>}, {pipeline_mode = #tpu.pipeline_mode<synchronous>, transform_indices = @transform_6, window_bounds = array<i64: 1, 128>}, {transform_indices = @transform_7, window_bounds = array<i64: 8, 1>}]} {
    %c0 = arith.constant 0 : index
    %c0_0 = arith.constant 0 : index
    %0 = vector.load %arg1[%c0, %c0_0] : memref<8x32xf32, #tpu.memory_space<vmem>>, vector<8x32xf32>
    %c0_1 = arith.constant 0 : index
    %c0_2 = arith.constant 0 : index
    %1 = vector.load %arg2[%c0_1, %c0_2] : memref<32x128xf32, #tpu.memory_space<vmem>>, vector<32x128xf32>
    %cst = arith.constant dense<0.000000e+00> : vector<8x128xf32>
    %2 = tpu.matmul %0, %1, %cst {dimension_numbers = #tpu.dot_dimension_numbers<[1], [0], [0], [1], [0, 0, 1, 1], [], []>} : vector<8x32xf32>, vector<32x128xf32>, vector<8x128xf32> -> vector<8x128xf32>
    %c0_3 = arith.constant 0 : index
    %c0_4 = arith.constant 0 : index
    %3 = vector.load %arg3[%c0_3, %c0_4] : memref<1x128xf32, #tpu.memory_space<vmem>>, vector<1x128xf32>
    %4 = vector.broadcast %3 : vector<1x128xf32> to vector<8x128xf32>
    %5 = arith.addf %2, %4 : vector<8x128xf32>
    %cst_5 = arith.constant 0.000000e+00 : f32
    %6 = vector.broadcast %cst_5 : f32 to vector<8x128xf32>
    %7 = arith.maximumf %5, %6 : vector<8x128xf32>
    %c0_6 = arith.constant 0 : index
    %c0_7 = arith.constant 0 : index
    %8 = vector.load %arg4[%c0_6, %c0_7] : memref<128x128xf32, #tpu.memory_space<vmem>>, vector<128x128xf32>
    %cst_8 = arith.constant dense<0.000000e+00> : vector<8x128xf32>
    %9 = tpu.matmul %7, %8, %cst_8 {dimension_numbers = #tpu.dot_dimension_numbers<[1], [0], [0], [1], [0, 0, 1, 1], [], []>} : vector<8x128xf32>, vector<128x128xf32>, vector<8x128xf32> -> vector<8x128xf32>
    %c0_9 = arith.constant 0 : index
    %c0_10 = arith.constant 0 : index
    %10 = vector.load %arg5[%c0_9, %c0_10] : memref<1x128xf32, #tpu.memory_space<vmem>>, vector<1x128xf32>
    %11 = vector.broadcast %10 : vector<1x128xf32> to vector<8x128xf32>
    %12 = arith.addf %9, %11 : vector<8x128xf32>
    %cst_11 = arith.constant 0.000000e+00 : f32
    %13 = vector.broadcast %cst_11 : f32 to vector<8x128xf32>
    %14 = arith.maximumf %12, %13 : vector<8x128xf32>
    %c0_12 = arith.constant 0 : index
    %c0_13 = arith.constant 0 : index
    %15 = vector.load %arg6[%c0_12, %c0_13] : memref<128x128xf32, #tpu.memory_space<vmem>>, vector<128x128xf32>
    %cst_14 = arith.constant dense<0.000000e+00> : vector<8x128xf32>
    %16 = tpu.matmul %14, %15, %cst_14 {dimension_numbers = #tpu.dot_dimension_numbers<[1], [0], [0], [1], [0, 0, 1, 1], [], []>} : vector<8x128xf32>, vector<128x128xf32>, vector<8x128xf32> -> vector<8x128xf32>
    %c0_15 = arith.constant 0 : index
    %c0_16 = arith.constant 0 : index
    %17 = vector.load %arg7[%c0_15, %c0_16] : memref<1x128xf32, #tpu.memory_space<vmem>>, vector<1x128xf32>
    %18 = vector.broadcast %17 : vector<1x128xf32> to vector<8x128xf32>
    %19 = arith.addf %16, %18 : vector<8x128xf32>
    %20 = vector.extract_strided_slice %19 {offsets = [0, 0], sizes = [8, 1], strides = [1, 1]} : vector<8x128xf32> to vector<8x1xf32>
    %cst_17 = arith.constant 0.000000e+00 : f32
    %21 = vector.broadcast %cst_17 : f32 to vector<8x1xf32>
    %22 = arith.subf %21, %20 : vector<8x1xf32>
    %23 = math.exp %22 : vector<8x1xf32>
    %cst_18 = arith.constant 1.000000e+00 : f32
    %24 = vector.broadcast %cst_18 : f32 to vector<8x1xf32>
    %25 = arith.addf %24, %23 : vector<8x1xf32>
    %26 = tpu.reciprocal %25 : vector<8x1xf32> -> vector<8x1xf32>
    %c0_19 = arith.constant 0 : index
    %c0_20 = arith.constant 0 : index
    %27 = vector.load %arg8[%c0_19, %c0_20] : memref<8x1xf32, #tpu.memory_space<vmem>>, vector<8x1xf32>
    tpu.vector_store %arg8[%c0_19, %c0_20], %26 {strides = array<i32>} : memref<8x1xf32, #tpu.memory_space<vmem>>, vector<8x1xf32>,
    return
  }
  func.func @transform_0(%arg0: i32) -> (i32, i32) {
    %c0_i32 = arith.constant 0 : i32
    %c0_i32_0 = arith.constant 0 : i32
    return %arg0, %c0_i32 : i32, i32
  }
  func.func @transform_1(%arg0: i32) -> (i32, i32) {
    %c0_i32 = arith.constant 0 : i32
    %c0_i32_0 = arith.constant 0 : i32
    %c0_i32_1 = arith.constant 0 : i32
    return %c0_i32, %c0_i32_0 : i32, i32
  }
  func.func @transform_2(%arg0: i32) -> (i32, i32) {
    %c0_i32 = arith.constant 0 : i32
    %c0_i32_0 = arith.constant 0 : i32
    %c0_i32_1 = arith.constant 0 : i32
    return %c0_i32, %c0_i32_0 : i32, i32
  }
  func.func @transform_3(%arg0: i32) -> (i32, i32) {
    %c0_i32 = arith.constant 0 : i32
    %c0_i32_0 = arith.constant 0 : i32
    %c0_i32_1 = arith.constant 0 : i32
    return %c0_i32, %c0_i32_0 : i32, i32
  }
  func.func @transform_4(%arg0: i32) -> (i32, i32) {
    %c0_i32 = arith.constant 0 : i32
    %c0_i32_0 = arith.constant 0 : i32
    %c0_i32_1 = arith.constant 0 : i32
    return %c0_i32, %c0_i32_0 : i32, i32
  }
  func.func @transform_5(%arg0: i32) -> (i32, i32) {
    %c0_i32 = arith.constant 0 : i32
    %c0_i32_0 = arith.constant 0 : i32
    %c0_i32_1 = arith.constant 0 : i32
    return %c0_i32, %c0_i32_0 : i32, i32
  }
  func.func @transform_6(%arg0: i32) -> (i32, i32) {
    %c0_i32 = arith.constant 0 : i32
    %c0_i32_0 = arith.constant 0 : i32
    %c0_i32_1 = arith.constant 0 : i32
    return %c0_i32, %c0_i32_0 : i32, i32
  }
  func.func @transform_7(%arg0: i32) -> (i32, i32) {
    %c0_i32 = arith.constant 0 : i32
    %c0_i32_0 = arith.constant 0 : i32
    return %arg0, %c0_i32 : i32, i32
  }
}

</mosaic_0001>

<llo_original>
// kernel: baseline_network_forward.1
$region0: #{baseline_network_forward.1}
  #allocation0 [shape = 'u32[]', space=smem, size = 0x4, offset = 0x4, fixed_abs, tag = 'smem constant byte address 0x4 - core index']
  #allocation1 [shape = 'u32[144,128]{1,0:T(1,128)}', space=vmem, size = 0x12000, scoped, tag = 'internal scratch']
  %s0 = inlined_call_operand.vmem [shape: f32[8,32], index: 0, kind: input, shape index: {}]
  %s1 = inlined_call_operand.vmem [shape: f32[32,128], index: 1, kind: input, shape index: {}]
  %s2 = inlined_call_operand.vmem [shape: f32[1,128], index: 2, kind: input, shape index: {}]
  %s3 = inlined_call_operand.vmem [shape: f32[128,128], index: 3, kind: input, shape index: {}]
  %s4 = inlined_call_operand.vmem [shape: f32[1,128], index: 4, kind: input, shape index: {}]
  %s5 = inlined_call_operand.vmem [shape: f32[128,128], index: 5, kind: input, shape index: {}]
  %s6 = inlined_call_operand.vmem [shape: f32[1,128], index: 6, kind: input, shape index: {}]
  %s7 = inlined_call_operand.vmem [shape: f32[8,1], index: 7, kind: output, shape index: {}]
  %s8 = sld [smem:[#allocation0]]
  $region38: #{baseline_network_forward.1} parent=0
    _
  %s10 = ssub.s32 1, %s8
  %s11 = scalar_select 0, %s10, %s8
  // Predicated region
  $region2: #{baseline_network_forward.1} parent=0 // pred_check
    _
  $region3: #{baseline_network_forward.1} parent=0 // pred_check_branch
    %13 = sbr.rel (0) target = $region5
  $region4: #{baseline_network_forward.1} parent=0 // pred_region
    _
  $region5: #{baseline_network_forward.1} parent=0 // pred_fallthru
    _
  // Predicated region
  $region6: #{baseline_network_forward.1} parent=0 // pred_check
    _
  $region7: #{baseline_network_forward.1} parent=0 // pred_check_branch
    %15 = sbr.rel (0) target = $region9
  $region8: #{baseline_network_forward.1} parent=0 // pred_region
    _
  $region9: #{baseline_network_forward.1} parent=0 // pred_fallthru
    _
  // Predicated region
  $region10: #{baseline_network_forward.1} parent=0 // pred_check
    _
  $region11: #{baseline_network_forward.1} parent=0 // pred_check_branch
    %17 = sbr.rel (0) target = $region13
  $region12: #{baseline_network_forward.1} parent=0 // pred_region
    _
  $region13: #{baseline_network_forward.1} parent=0 // pred_fallthru
    _
  // Predicated region
  $region14: #{baseline_network_forward.1} parent=0 // pred_check
    _
  $region15: #{baseline_network_forward.1} parent=0 // pred_check_branch
    %19 = sbr.rel (0) target = $region17
  $region16: #{baseline_network_forward.1} parent=0 // pred_region
    _
  $region17: #{baseline_network_forward.1} parent=0 // pred_fallthru
    _
  // Predicated region
  $region18: #{baseline_network_forward.1} parent=0 // pred_check
    _
  $region19: #{baseline_network_forward.1} parent=0 // pred_check_branch
    %21 = sbr.rel (0) target = $region21
  $region20: #{baseline_network_forward.1} parent=0 // pred_region
    _
  $region21: #{baseline_network_forward.1} parent=0 // pred_fallthru
    _
  // Predicated region
  $region22: #{baseline_network_forward.1} parent=0 // pred_check
    _
  $region23: #{baseline_network_forward.1} parent=0 // pred_check_branch
    %23 = sbr.rel (0) target = $region25
  $region24: #{baseline_network_forward.1} parent=0 // pred_region
    _
  $region25: #{baseline_network_forward.1} parent=0 // pred_fallthru
    _
  // Predicated region
  $region26: #{baseline_network_forward.1} parent=0 // pred_check
    _
  $region27: #{baseline_network_forward.1} parent=0 // pred_check_branch
    %25 = sbr.rel (0) target = $region29
  $region28: #{baseline_network_forward.1} parent=0 // pred_region
    _
  $region29: #{baseline_network_forward.1} parent=0 // pred_fallthru
    _
  %v26 = vld [vmem:[%s0] sm:$0xff]
  %v27 = vld [vmem:[%s1] sm:$0xff]
  %v28 = vld [vmem:[%s1 + $0x8] sm:$0xff]
  %v29 = vld [vmem:[%s1 + $0x10] sm:$0xff]
  %v30 = vld [vmem:[%s1 + $0x18] sm:$0xff]
  %v31 = vld [vmem:[%s2] sm:$0x1]
  %v33 = vlaneseq
  %v34 = vshrl.u32 %v33, 7
  %v35 = vsub.s32 0, %v34
  %v36 = vrot.slane %v31, %v35
  %vm38 = vcmask 261120
  %v40 = vsel %vm38, %v26, 0
  %42 = vmatprep.subr.mxu0 0.0
  %43 = vmatpush1.msra.mxu0 %v27
  %44 = vmatprep.subr.mxu0 0.0
  %45 = vmatpush1.msra.mxu0 %v28
  %46 = vmatprep.subr.mxu0 0.0
  %47 = vmatpush1.msra.mxu0 %v29
  %48 = vmatprep.subr.mxu0 0.0
  %49 = vmatpush1.msra.mxu0 %v30
  %50 = vmatprep.subr.mxu0 0.0
  %51 = vmatpush1.msra.mxu0 0.0
  %52 = vmatprep.subr.mxu0 0.0
  %53 = vmatpush1.msra.mxu0 0.0
  %54 = vmatprep.subr.mxu0 0.0
  %55 = vmatpush1.msra.mxu0 0.0
  %56 = vmatprep.subr.mxu0 0.0
  %57 = vmatpush1.msra.mxu0 0.0
  %58 = vmatprep.subr.mxu0 0.0
  %59 = vmatpush1.msra.mxu0 0.0
  %60 = vmatprep.subr.mxu0 0.0
  %61 = vmatpush1.msra.mxu0 0.0
  %62 = vmatprep.subr.mxu0 0.0
  %63 = vmatpush1.msra.mxu0 0.0
  %64 = vmatprep.subr.mxu0 0.0
  %65 = vmatpush1.msra.mxu0 0.0
  %66 = vmatprep.subr.mxu0 0.0
  %67 = vmatpush1.msra.mxu0 0.0
  %68 = vmatprep.subr.mxu0 0.0
  %69 = vmatpush1.msra.mxu0 0.0
  %70 = vmatprep.subr.mxu0 0.0
  %71 = vmatpush1.msra.mxu0 0.0
  %72 = vmatprep.subr.mxu0 0.0
  %73 = vmatpush1.msra.mxu0 0.0
  %74 = vmatprep.subr.mxu0 0.0
  %75 = vmatpush1.msra.mxu0 0.0
  %76 = vmatprep.subr.mxu0 0.0
  %77 = vmatpush1.msra.mxu0 0.0
  %78 = vmatprep.subr.mxu0 0.0
  %79 = vmatpush1.msra.mxu0 0.0
  %80 = vmatprep.subr.mxu0 0.0
  %81 = vmatpush1.msra.mxu0 0.0
  %82 = vmatprep.subr.mxu0 0.0
  %83 = vmatpush1.msra.mxu0 0.0
  %84 = vmatprep.subr.mxu0 0.0
  %85 = vmatpush1.msra.mxu0 0.0
  %86 = vmatprep.subr.mxu0 0.0
  %87 = vmatpush1.msra.mxu0 0.0
  %88 = vmatprep.subr.mxu0 0.0
  %89 = vmatpush1.msra.mxu0 0.0
  %90 = vmatprep.subr.mxu0 0.0
  %91 = vmatpush1.msra.mxu0 0.0
  %92 = vmatprep.subr.mxu0 0.0
  %93 = vmatpush1.msra.mxu0 0.0
  %94 = vmatprep.subr.mxu0 0.0
  %95 = vmatpush1.msra.mxu0 0.0
  %96 = vmatprep.subr.mxu0 0.0
  %97 = vmatpush1.msra.mxu0 0.0
  %98 = vmatprep.subr.mxu0 0.0
  %99 = vmatpush1.msra.mxu0 0.0
  %100 = vmatprep.subr.mxu0 0.0
  %101 = vmatpush1.msra.mxu0 0.0
  %102 = vmatprep.subr.mxu0 0.0
  %103 = vmatpush1.msra.mxu0 0.0
  %104 = vmatprep.subr.mxu0 0.0
  %105 = vmatpush1.msra.mxu0 0.0
  %106 = vmatprep.mubr.f32.mxu0 0.0
  %107 = vmatmul.mubr.f32.gmra.mrb[0].mxu0 %v40
  %v108 = vpop.f32.mrb[0].mxu0
  %v109 = vadd.f32 %v36, %v108
  %v110 = vpop.f32.mrb[0].mxu0
  %111 = vdwg.mxu0
  %v112 = vmax.f32 %v109, 0.0
  %v113 = vld [vmem:[%s3] sm:$0xff]
  %v114 = vld [vmem:[%s3 + $0x8] sm:$0xff]
  %v115 = vld [vmem:[%s3 + $0x10] sm:$0xff]
  %v116 = vld [vmem:[%s3 + $0x18] sm:$0xff]
  %v117 = vld [vmem:[%s3 + $0x20] sm:$0xff]
  %v118 = vld [vmem:[%s3 + $0x28] sm:$0xff]
  %v119 = vld [vmem:[%s3 + $0x30] sm:$0xff]
  %v120 = vld [vmem:[%s3 + $0x38] sm:$0xff]
  %v121 = vld [vmem:[%s3 + $0x40] sm:$0xff]
  %v122 = vld [vmem:[%s3 + $0x48] sm:$0xff]
  %v123 = vld [vmem:[%s3 + $0x50] sm:$0xff]
  %v124 = vld [vmem:[%s3 + $0x58] sm:$0xff]
  %v125 = vld [vmem:[%s3 + $0x60] sm:$0xff]
  %v126 = vld [vmem:[%s3 + $0x68] sm:$0xff]
  %v127 = vld [vmem:[%s3 + $0x70] sm:$0xff]
  %v128 = vld [vmem:[%s3 + $0x78] sm:$0xff]
  %v129 = vld [vmem:[%s4] sm:$0x1]
  %v131 = vlaneseq
  %v132 = vshrl.u32 %v131, 7
  %v133 = vsub.s32 0, %v132
  %v134 = vrot.slane %v129, %v133
  %136 = vmatprep.subr.mxu0 0.0
  %137 = vmatpush1.msra.mxu0 %v113
  %138 = vmatprep.subr.mxu0 0.0
  %139 = vmatpush1.msra.mxu0 %v114
  %140 = vmatprep.subr.mxu0 0.0
  %141 = vmatpush1.msra.mxu0 %v115
  %142 = vmatprep.subr.mxu0 0.0
  %143 = vmatpush1.msra.mxu0 %v116
  %144 = vmatprep.subr.mxu0 0.0
  %145 = vmatpush1.msra.mxu0 %v117
  %146 = vmatprep.subr.mxu0 0.0
  %147 = vmatpush1.msra.mxu0 %v118
  %148 = vmatprep.subr.mxu0 0.0
  %149 = vmatpush1.msra.mxu0 %v119
  %150 = vmatprep.subr.mxu0 0.0
  %151 = vmatpush1.msra.mxu0 %v120
  %152 = vmatprep.subr.mxu0 0.0
  %153 = vmatpush1.msra.mxu0 %v121
  %154 = vmatprep.subr.mxu0 0.0
  %155 = vmatpush1.msra.mxu0 %v122
  %156 = vmatprep.subr.mxu0 0.0
  %157 = vmatpush1.msra.mxu0 %v123
  %158 = vmatprep.subr.mxu0 0.0
  %159 = vmatpush1.msra.mxu0 %v124
  %160 = vmatprep.subr.mxu0 0.0
  %161 = vmatpush1.msra.mxu0 %v125
  %162 = vmatprep.subr.mxu0 0.0
  %163 = vmatpush1.msra.mxu0 %v126
  %164 = vmatprep.subr.mxu0 0.0
  %165 = vmatpush1.msra.mxu0 %v127
  %166 = vmatprep.subr.mxu0 0.0
  %167 = vmatpush1.msra.mxu0 %v128
  %168 = vmatprep.subr.mxu0 0.0
  %169 = vmatpush1.msra.mxu0 0.0
  %170 = vmatprep.subr.mxu0 0.0
  %171 = vmatpush1.msra.mxu0 0.0
  %172 = vmatprep.subr.mxu0 0.0
  %173 = vmatpush1.msra.mxu0 0.0
  %174 = vmatprep.subr.mxu0 0.0
  %175 = vmatpush1.msra.mxu0 0.0
  %176 = vmatprep.subr.mxu0 0.0
  %177 = vmatpush1.msra.mxu0 0.0
  %178 = vmatprep.subr.mxu0 0.0
  %179 = vmatpush1.msra.mxu0 0.0
  %180 = vmatprep.subr.mxu0 0.0
  %181 = vmatpush1.msra.mxu0 0.0
  %182 = vmatprep.subr.mxu0 0.0
  %183 = vmatpush1.msra.mxu0 0.0
  %184 = vmatprep.subr.mxu0 0.0
  %185 = vmatpush1.msra.mxu0 0.0
  %186 = vmatprep.subr.mxu0 0.0
  %187 = vmatpush1.msra.mxu0 0.0
  %188 = vmatprep.subr.mxu0 0.0
  %189 = vmatpush1.msra.mxu0 0.0
  %190 = vmatprep.subr.mxu0 0.0
  %191 = vmatpush1.msra.mxu0 0.0
  %192 = vmatprep.subr.mxu0 0.0
  %193 = vmatpush1.msra.mxu0 0.0
  %194 = vmatprep.subr.mxu0 0.0
  %195 = vmatpush1.msra.mxu0 0.0
  %196 = vmatprep.subr.mxu0 0.0
  %197 = vmatpush1.msra.mxu0 0.0
  %198 = vmatprep.subr.mxu0 0.0
  %199 = vmatpush1.msra.mxu0 0.0
  %200 = vmatprep.mubr.f32.mxu0 0.0
  %201 = vmatmul.mubr.f32.gmra.mrb[0].mxu0 %v112
  %v202 = vpop.f32.mrb[0].mxu0
  %v203 = vadd.f32 %v134, %v202
  %v204 = vpop.f32.mrb[0].mxu0
  %205 = vdwg.mxu0
  %v206 = vmax.f32 %v203, 0.0
  %v207 = vld [vmem:[%s5] sm:$0xff]
  %v208 = vld [vmem:[%s5 + $0x8] sm:$0xff]
  %v209 = vld [vmem:[%s5 + $0x10] sm:$0xff]
  %v210 = vld [vmem:[%s5 + $0x18] sm:$0xff]
  %v211 = vld [vmem:[%s5 + $0x20] sm:$0xff]
  %v212 = vld [vmem:[%s5 + $0x28] sm:$0xff]
  %v213 = vld [vmem:[%s5 + $0x30] sm:$0xff]
  %v214 = vld [vmem:[%s5 + $0x38] sm:$0xff]
  %v215 = vld [vmem:[%s5 + $0x40] sm:$0xff]
  %v216 = vld [vmem:[%s5 + $0x48] sm:$0xff]
  %v217 = vld [vmem:[%s5 + $0x50] sm:$0xff]
  %v218 = vld [vmem:[%s5 + $0x58] sm:$0xff]
  %v219 = vld [vmem:[%s5 + $0x60] sm:$0xff]
  %v220 = vld [vmem:[%s5 + $0x68] sm:$0xff]
  %v221 = vld [vmem:[%s5 + $0x70] sm:$0xff]
  %v222 = vld [vmem:[%s5 + $0x78] sm:$0xff]
  %v223 = vld [vmem:[%s6] sm:$0x1]
  %v225 = vlaneseq
  %v226 = vshrl.u32 %v225, 7
  %v227 = vsub.s32 0, %v226
  %v228 = vrot.slane %v223, %v227
  %230 = vmatprep.subr.mxu0 0.0
  %231 = vmatpush1.msra.mxu0 %v207
  %232 = vmatprep.subr.mxu0 0.0
  %233 = vmatpush1.msra.mxu0 %v208
  %234 = vmatprep.subr.mxu0 0.0
  %235 = vmatpush1.msra.mxu0 %v209
  %236 = vmatprep.subr.mxu0 0.0
  %237 = vmatpush1.msra.mxu0 %v210
  %238 = vmatprep.subr.mxu0 0.0
  %239 = vmatpush1.msra.mxu0 %v211
  %240 = vmatprep.subr.mxu0 0.0
  %241 = vmatpush1.msra.mxu0 %v212
  %242 = vmatprep.subr.mxu0 0.0
  %243 = vmatpush1.msra.mxu0 %v213
  %244 = vmatprep.subr.mxu0 0.0
  %245 = vmatpush1.msra.mxu0 %v214
  %246 = vmatprep.subr.mxu0 0.0
  %247 = vmatpush1.msra.mxu0 %v215
  %248 = vmatprep.subr.mxu0 0.0
  %249 = vmatpush1.msra.mxu0 %v216
  %250 = vmatprep.subr.mxu0 0.0
  %251 = vmatpush1.msra.mxu0 %v217
  %252 = vmatprep.subr.mxu0 0.0
  %253 = vmatpush1.msra.mxu0 %v218
  %254 = vmatprep.subr.mxu0 0.0
  %255 = vmatpush1.msra.mxu0 %v219
  %256 = vmatprep.subr.mxu0 0.0
  %257 = vmatpush1.msra.mxu0 %v220
  %258 = vmatprep.subr.mxu0 0.0
  %259 = vmatpush1.msra.mxu0 %v221
  %260 = vmatprep.subr.mxu0 0.0
  %261 = vmatpush1.msra.mxu0 %v222
  %262 = vmatprep.subr.mxu0 0.0
  %263 = vmatpush1.msra.mxu0 0.0
  %264 = vmatprep.subr.mxu0 0.0
  %265 = vmatpush1.msra.mxu0 0.0
  %266 = vmatprep.subr.mxu0 0.0
  %267 = vmatpush1.msra.mxu0 0.0
  %268 = vmatprep.subr.mxu0 0.0
  %269 = vmatpush1.msra.mxu0 0.0
  %270 = vmatprep.subr.mxu0 0.0
  %271 = vmatpush1.msra.mxu0 0.0
  %272 = vmatprep.subr.mxu0 0.0
  %273 = vmatpush1.msra.mxu0 0.0
  %274 = vmatprep.subr.mxu0 0.0
  %275 = vmatpush1.msra.mxu0 0.0
  %276 = vmatprep.subr.mxu0 0.0
  %277 = vmatpush1.msra.mxu0 0.0
  %278 = vmatprep.subr.mxu0 0.0
  %279 = vmatpush1.msra.mxu0 0.0
  %280 = vmatprep.subr.mxu0 0.0
  %281 = vmatpush1.msra.mxu0 0.0
  %282 = vmatprep.subr.mxu0 0.0
  %283 = vmatpush1.msra.mxu0 0.0
  %284 = vmatprep.subr.mxu0 0.0
  %285 = vmatpush1.msra.mxu0 0.0
  %286 = vmatprep.subr.mxu0 0.0
  %287 = vmatpush1.msra.mxu0 0.0
  %288 = vmatprep.subr.mxu0 0.0
  %289 = vmatpush1.msra.mxu0 0.0
  %290 = vmatprep.subr.mxu0 0.0
  %291 = vmatpush1.msra.mxu0 0.0
  %292 = vmatprep.subr.mxu0 0.0
  %293 = vmatpush1.msra.mxu0 0.0
  %294 = vmatprep.mubr.f32.mxu0 0.0
  %295 = vmatmul.mubr.f32.gmra.mrb[0].mxu0 %v206
  %v296 = vpop.f32.mrb[0].mxu0
  %v297 = vadd.f32 %v228, %v296
  %v298 = vpop.f32.mrb[0].mxu0
  %299 = vdwg.mxu0
  %v300 = vsub.f32 0.0, %v297
  %v301 = vmul.f32 %v300, 1.442695
  %v302 = vpow.pop %v301
  %v303 = vadd.f32 %v302, 1.0
  %v304 = vrcp.pop %v303
  %vm305 = vcmask 7168
  %306 = vst.msk [vmem:[%s7] sm:$0xff] %vm305, %v304
  // Predicated region
  $region30: #{baseline_network_forward.1} parent=0 // pred_check
    _
  $region31: #{baseline_network_forward.1} parent=0 // pred_check_branch
    %308 = sbr.rel (0) target = $region33
  $region32: #{baseline_network_forward.1} parent=0 // pred_region
    _
  $region33: #{baseline_network_forward.1} parent=0 // pred_fallthru
    _
  // Predicated region
  $region34: #{baseline_network_forward.1} parent=0 // pred_check
    _
  $region35: #{baseline_network_forward.1} parent=0 // pred_check_branch
    %310 = sbr.rel (0) target = $region37
  $region36: #{baseline_network_forward.1} parent=0 // pred_region
    _
  $region37: #{baseline_network_forward.1} parent=0 // pred_fallthru
    _

</llo_original>
